<compile_context>
chip_gen: v5e
topology: v5e:2x2
jax: 0.10.0
libtpu: 0.0.40
codegen_flags: <defaults>
</compile_context>

<pallas_src>
import functools

import jax
import jax.numpy as jnp
from jax.experimental import pallas as pl
from jax.experimental.pallas import tpu as pltpu


def _loss_kernel(recon_ref, x_ref, *rest,
                 loss_type, model_type, total_batch, steps, tb, needs_mask):
    if model_type == 'VAE':
        mu_ref, logvar_ref, loss_ref, kld_ref = rest
    else:
        (loss_ref,) = rest
        kld_ref = None

    c = pl.program_id(0)   # parallel half (megacore split on v7x)
    i = pl.program_id(1)   # serial reduction step within the half

    @pl.when(i == 0)
    def _():
        loss_ref[...] = jnp.zeros_like(loss_ref)
        if model_type == 'VAE':
            kld_ref[...] = jnp.zeros_like(kld_ref)

    # Row-validity mask: handles the batch tail of the last block and the
    # duplicated (index-clamped) blocks of the second half when nblocks is odd.
    # Skipped entirely (trace time) when the grid tiles the batch exactly.
    if needs_mask:
        row0 = (c * steps + i) * tb
        rows = row0 + jax.lax.broadcasted_iota(jnp.int32, (tb, 1), 0)
        valid = rows < total_batch
    else:
        valid = None

    r = recon_ref[...].astype(jnp.float32)    # (tb, N)
    xv = x_ref[...].astype(jnp.float32)       # (tb, N)

    if loss_type == 'Multinomial':
        # -sum(log_softmax(r, axis=1) * x, axis=1), fused form.
        m = jnp.max(r, axis=-1, keepdims=True)
        lse = jnp.log(jnp.sum(jnp.exp(r - m), axis=-1, keepdims=True))
        rx = jnp.sum(r * xv, axis=-1, keepdims=True)
        xs = jnp.sum(xv, axis=-1, keepdims=True)
        row_loss = xs * (m + lse) - rx
    elif loss_type == 'Gaussian':
        # F.mse_loss: mean over all elements -> accumulate sum of squares.
        d = r - xv
        row_loss = jnp.sum(d * d, axis=-1, keepdims=True)
    elif loss_type == 'Logistic':
        # binary_cross_entropy(sigmoid(r), x).sum(1).mean()  (stable logits form)
        bce = jnp.maximum(r, 0.0) - r * xv + jnp.log1p(jnp.exp(-jnp.abs(r)))
        row_loss = jnp.sum(bce, axis=-1, keepdims=True)
    else:
        raise ValueError(f"unknown loss_type {loss_type}")

    if needs_mask:
        row_loss = jnp.where(valid, row_loss, 0.0)
    loss_ref[...] += row_loss.reshape(1, tb, 1)

    if model_type == 'VAE':
        mu = mu_ref[...].astype(jnp.float32)       # (tb, D)
        lv = logvar_ref[...].astype(jnp.float32)   # (tb, D)
        kld_row = -0.5 * jnp.sum(1.0 + lv - mu * mu - jnp.exp(lv),
                                 axis=-1, keepdims=True)
        if needs_mask:
            kld_row = jnp.where(valid, kld_row, 0.0)
        kld_ref[...] += kld_row.reshape(1, tb, 1)


def _pick_tile(batch, n_items, vae_dim, target_bytes=24 << 20):
    """Largest row tile s.t. all streamed inputs x 2 pipeline buffers fit budget."""
    per_row_bytes = 16 * max(n_items + vae_dim, 1)   # 2 streams x 2 bufs x 4B each
    tb = target_bytes // per_row_bytes
    tb = int(max(8, min(1024, (tb // 8) * 8)))
    if batch < 8:
        return batch                       # single block == full (tiny) batch dim
    return min(tb, (batch // 8) * 8)       # keep tb a multiple of 8, <= batch


class LossFunc:
    """JAX/Pallas port of airflow/multi_vae/model.py::LossFunc (forward)."""

    def __init__(self, loss_type='Multinomial', model_type=None):
        self.loss_type = loss_type
        self.model_type = model_type

    def __call__(self, recon_x=None, x=None, mu=None, logvar=None, anneal=None):
        B, N = recon_x.shape
        is_vae = self.model_type == 'VAE'
        D = mu.shape[1] if is_vae else 0

        tb = _pick_tile(B, N, D)
        nblocks = -(-B // tb)                       # ceil(B / tb)
        npar = 2 if nblocks >= 2 else 1             # megacore split only if useful
        steps = -(-nblocks // npar)                 # blocks per parallel half
        grid = (npar, steps)
        needs_mask = (npar * steps * tb) != B       # tail / duplicated blocks?

        def row_map(c, i):
            # Clamp so tail / duplicated steps stay in bounds (masked in kernel).
            return (jnp.minimum(c * steps + i, nblocks - 1), 0)

        in_specs = [pl.BlockSpec((tb, N), row_map),   # recon_x tile
                    pl.BlockSpec((tb, N), row_map)]   # x tile
        inputs = [recon_x, x]
        out_shapes = [jax.ShapeDtypeStruct((npar, tb, 1), jnp.float32)]
        out_specs = [pl.BlockSpec((1, tb, 1), lambda c, i: (c, 0, 0))]

        if is_vae:
            assert mu is not None and logvar is not None and anneal is not None
            in_specs += [pl.BlockSpec((tb, D), row_map),
                         pl.BlockSpec((tb, D), row_map)]
            inputs += [mu, logvar]
            out_shapes.append(jax.ShapeDtypeStruct((npar, tb, 1), jnp.float32))
            out_specs.append(pl.BlockSpec((1, tb, 1), lambda c, i: (c, 0, 0)))

        kernel = functools.partial(
            _loss_kernel, loss_type=self.loss_type, model_type=self.model_type,
            total_batch=B, steps=steps, tb=tb, needs_mask=needs_mask)

        outs = pl.pallas_call(
            kernel,
            out_shape=tuple(out_shapes),
            grid_spec=pltpu.PrefetchScalarGridSpec(
                num_scalar_prefetch=0,
                grid=grid,
                in_specs=in_specs,
                out_specs=tuple(out_specs)),
            compiler_params=pltpu.CompilerParams(
                dimension_semantics=("parallel", "arbitrary"),
                vmem_limit_bytes=32 * 1024 * 1024),
        )(*inputs)

        loss_sum = jnp.sum(outs[0])
        if self.loss_type == 'Gaussian':
            loss = loss_sum / jnp.float32(B * N)      # mse_loss: mean over all elems
        else:
            loss = loss_sum / jnp.float32(B)          # mean over batch
        if is_vae:
            kld = jnp.sum(outs[1]) / jnp.float32(B)
            loss = loss + jnp.asarray(anneal, dtype=jnp.float32) * kld
        return loss


def _reference(loss_type, model_type, recon_x, x, mu, logvar, anneal):
    if loss_type == 'Multinomial':
        loss = -jnp.mean(jnp.sum(jax.nn.log_softmax(recon_x, axis=1) * x, axis=-1))
    elif loss_type == 'Gaussian':
        loss = jnp.mean((recon_x - x) ** 2)
    elif loss_type == 'Logistic':
        p = jax.nn.sigmoid(recon_x)
        bce = -(x * jnp.log(p) + (1 - x) * jnp.log(1 - p))
        loss = jnp.mean(jnp.sum(bce, axis=1))
    if model_type == 'VAE':
        kld = -0.5 * jnp.mean(jnp.sum(1 + logvar - mu ** 2 - jnp.exp(logvar), axis=1))
        loss = loss + anneal * kld
    return loss


if __name__ == "__main__":
    key = jax.random.PRNGKey(0)
    k1, k2, k3, k4 = jax.random.split(key, 4)

    B, N, D = 16, 256, 32
    recon_x = jax.random.normal(k1, (B, N), dtype=jnp.float32)
    x = (jax.random.uniform(k2, (B, N)) > 0.8).astype(jnp.float32)
    mu = 0.1 * jax.random.normal(k3, (B, D), dtype=jnp.float32)
    logvar = 0.1 * jax.random.normal(k4, (B, D), dtype=jnp.float32)
    anneal = 0.2

    # 1) Multinomial + VAE (the multi-vae training configuration)
    out = LossFunc('Multinomial', 'VAE')(recon_x=recon_x, x=x, mu=mu,
                                         logvar=logvar, anneal=anneal)
    out = jax.block_until_ready(out)
    ref = _reference('Multinomial', 'VAE', recon_x, x, mu, logvar, anneal)
    assert jnp.allclose(out, ref, rtol=1e-4, atol=1e-4), (out, ref)

    # 2) Default configuration (Multinomial only, no KLD / no mu-logvar stream)
    out2 = jax.block_until_ready(LossFunc()(recon_x=recon_x, x=x))
    ref2 = _reference('Multinomial', None, recon_x, x, None, None, None)
    assert jnp.allclose(out2, ref2, rtol=1e-4, atol=1e-4), (out2, ref2)

    # 3) Gaussian
    out3 = jax.block_until_ready(LossFunc('Gaussian')(recon_x=recon_x, x=x))
    ref3 = _reference('Gaussian', None, recon_x, x, None, None, None)
    assert jnp.allclose(out3, ref3, rtol=1e-4, atol=1e-4), (out3, ref3)

    # 4) Logistic
    out4 = jax.block_until_ready(LossFunc('Logistic')(recon_x=recon_x, x=x))
    ref4 = _reference('Logistic', None, recon_x, x, None, None, None)
    assert jnp.allclose(out4, ref4, rtol=1e-4, atol=1e-4), (out4, ref4)

    # 5) Ragged batch (B not a multiple of the tile) exercises the row mask.
    Br = 13
    out5 = LossFunc('Multinomial', 'VAE')(recon_x=recon_x[:Br], x=x[:Br],
                                          mu=mu[:Br], logvar=logvar[:Br],
                                          anneal=anneal)
    out5 = jax.block_until_ready(out5)
    ref5 = _reference('Multinomial', 'VAE', recon_x[:Br], x[:Br],
                      mu[:Br], logvar[:Br], anneal)
    assert jnp.allclose(out5, ref5, rtol=1e-4, atol=1e-4), (out5, ref5)

    # 6) Tiny batch (B < 8): single-block path, parallel axis collapses to 1.
    Bt = 4
    out6 = jax.block_until_ready(LossFunc()(recon_x=recon_x[:Bt], x=x[:Bt]))
    ref6 = _reference('Multinomial', None, recon_x[:Bt], x[:Bt], None, None, None)
    assert jnp.allclose(out6, ref6, rtol=1e-4, atol=1e-4), (out6, ref6)

    print("KERNEL_OK")
</pallas_src>

<mosaic_0001>
module attributes {stable_mosaic.version = 11 : i64} {
  func.func @_loss_kernel(%arg0: i32, %arg1: i32, %arg2: memref<16x256xf32, #tpu.memory_space<vmem>>, %arg3: memref<16x256xf32, #tpu.memory_space<vmem>>, %arg4: memref<16x32xf32, #tpu.memory_space<vmem>>, %arg5: memref<16x32xf32, #tpu.memory_space<vmem>>, %arg6: memref<1x16x1xf32, #tpu.memory_space<vmem>>, %arg7: memref<1x16x1xf32, #tpu.memory_space<vmem>>) attributes {dimension_semantics = [#tpu.dimension_semantics<parallel>, #tpu.dimension_semantics<arbitrary>], iteration_bounds = array<i64: 1, 1>, scalar_prefetch = 0 : i64, scratch_operands = 0 : i64, tpu.core_type = #tpu.core_type<tc>, window_params = [{transform_indices = @transform_0, window_bounds = array<i64: 16, 256>}, {transform_indices = @transform_1, window_bounds = array<i64: 16, 256>}, {transform_indices = @transform_2, window_bounds = array<i64: 16, 32>}, {transform_indices = @transform_3, window_bounds = array<i64: 16, 32>}, {transform_indices = @transform_4, window_bounds = array<i64: 1, 16, 1>}, {transform_indices = @transform_5, window_bounds = array<i64: 1, 16, 1>}]} {
    %c0_i32 = arith.constant 0 : i32
    %0 = arith.cmpi eq, %arg1, %c0_i32 : i32
    %1 = arith.extui %0 : i1 to i32
    %c0_i32_0 = arith.constant 0 : i32
    %2 = arith.cmpi ne, %1, %c0_i32_0 : i32
    scf.if %2 {
      %cst_26 = arith.constant 0.000000e+00 : f32
      %41 = vector.broadcast %cst_26 : f32 to vector<1x16x1xf32>
      %c0_27 = arith.constant 0 : index
      %c0_28 = arith.constant 0 : index
      %c0_29 = arith.constant 0 : index
      %42 = vector.load %arg6[%c0_27, %c0_28, %c0_29] : memref<1x16x1xf32, #tpu.memory_space<vmem>>, vector<1x16x1xf32>
      tpu.vector_store %arg6[%c0_27, %c0_28, %c0_29], %41 {strides = array<i32>} : memref<1x16x1xf32, #tpu.memory_space<vmem>>, vector<1x16x1xf32>,
      %cst_30 = arith.constant 0.000000e+00 : f32
      %43 = vector.broadcast %cst_30 : f32 to vector<1x16x1xf32>
      %c0_31 = arith.constant 0 : index
      %c0_32 = arith.constant 0 : index
      %c0_33 = arith.constant 0 : index
      %44 = vector.load %arg7[%c0_31, %c0_32, %c0_33] : memref<1x16x1xf32, #tpu.memory_space<vmem>>, vector<1x16x1xf32>
      tpu.vector_store %arg7[%c0_31, %c0_32, %c0_33], %43 {strides = array<i32>} : memref<1x16x1xf32, #tpu.memory_space<vmem>>, vector<1x16x1xf32>,
    } else {
    }
    %c0 = arith.constant 0 : index
    %c0_1 = arith.constant 0 : index
    %3 = vector.load %arg2[%c0, %c0_1] : memref<16x256xf32, #tpu.memory_space<vmem>>, vector<16x256xf32>
    %c0_2 = arith.constant 0 : index
    %c0_3 = arith.constant 0 : index
    %4 = vector.load %arg3[%c0_2, %c0_3] : memref<16x256xf32, #tpu.memory_space<vmem>>, vector<16x256xf32>
    %cst = arith.constant dense<0xFF800000> : vector<16xf32>
    %5 = vector.multi_reduction <maximumf>, %3, %cst [1] : vector<16x256xf32> to vector<16xf32>
    %6 = vector.shape_cast %5 : vector<16xf32> to vector<16x1xf32>
    %7 = vector.broadcast %6 : vector<16x1xf32> to vector<16x256xf32>
    %8 = arith.subf %3, %7 : vector<16x256xf32>
    %9 = math.exp %8 : vector<16x256xf32>
    %cst_4 = arith.constant dense<0.000000e+00> : vector<16xf32>
    %10 = vector.multi_reduction <add>, %9, %cst_4 [1] : vector<16x256xf32> to vector<16xf32>
    %11 = vector.shape_cast %10 : vector<16xf32> to vector<16x1xf32>
    %12 = math.log %11 : vector<16x1xf32>
    %13 = arith.mulf %3, %4 : vector<16x256xf32>
    %cst_5 = arith.constant dense<0.000000e+00> : vector<16xf32>
    %14 = vector.multi_reduction <add>, %13, %cst_5 [1] : vector<16x256xf32> to vector<16xf32>
    %15 = vector.shape_cast %14 : vector<16xf32> to vector<16x1xf32>
    %cst_6 = arith.constant dense<0.000000e+00> : vector<16xf32>
    %16 = vector.multi_reduction <add>, %4, %cst_6 [1] : vector<16x256xf32> to vector<16xf32>
    %17 = vector.shape_cast %16 : vector<16xf32> to vector<16x1xf32>
    %18 = arith.addf %6, %12 : vector<16x1xf32>
    %19 = arith.mulf %17, %18 : vector<16x1xf32>
    %20 = arith.subf %19, %15 : vector<16x1xf32>
    %c0_7 = arith.constant 0 : index
    %c0_8 = arith.constant 0 : index
    %c0_9 = arith.constant 0 : index
    %21 = vector.load %arg6[%c0_7, %c0_8, %c0_9] : memref<1x16x1xf32, #tpu.memory_space<vmem>>, vector<1x16x1xf32>
    %22 = vector.shape_cast %20 : vector<16x1xf32> to vector<1x16x1xf32>
    %23 = arith.addf %21, %22 : vector<1x16x1xf32>
    %c0_10 = arith.constant 0 : index
    %c0_11 = arith.constant 0 : index
    %c0_12 = arith.constant 0 : index
    %24 = vector.load %arg6[%c0_10, %c0_11, %c0_12] : memref<1x16x1xf32, #tpu.memory_space<vmem>>, vector<1x16x1xf32>
    tpu.vector_store %arg6[%c0_10, %c0_11, %c0_12], %23 {strides = array<i32>} : memref<1x16x1xf32, #tpu.memory_space<vmem>>, vector<1x16x1xf32>,
    %c0_13 = arith.constant 0 : index
    %c0_14 = arith.constant 0 : index
    %25 = vector.load %arg4[%c0_13, %c0_14] : memref<16x32xf32, #tpu.memory_space<vmem>>, vector<16x32xf32>
    %c0_15 = arith.constant 0 : index
    %c0_16 = arith.constant 0 : index
    %26 = vector.load %arg5[%c0_15, %c0_16] : memref<16x32xf32, #tpu.memory_space<vmem>>, vector<16x32xf32>
    %cst_17 = arith.constant 1.000000e+00 : f32
    %27 = vector.broadcast %cst_17 : f32 to vector<16x32xf32>
    %28 = arith.addf %27, %26 : vector<16x32xf32>
    %29 = arith.mulf %25, %25 : vector<16x32xf32>
    %30 = arith.subf %28, %29 : vector<16x32xf32>
    %31 = math.exp %26 : vector<16x32xf32>
    %32 = arith.subf %30, %31 : vector<16x32xf32>
    %cst_18 = arith.constant dense<0.000000e+00> : vector<16xf32>
    %33 = vector.multi_reduction <add>, %32, %cst_18 [1] : vector<16x32xf32> to vector<16xf32>
    %34 = vector.shape_cast %33 : vector<16xf32> to vector<16x1xf32>
    %cst_19 = arith.constant -5.000000e-01 : f32
    %35 = vector.broadcast %cst_19 : f32 to vector<16x1xf32>
    %36 = arith.mulf %35, %34 : vector<16x1xf32>
    %c0_20 = arith.constant 0 : index
    %c0_21 = arith.constant 0 : index
    %c0_22 = arith.constant 0 : index
    %37 = vector.load %arg7[%c0_20, %c0_21, %c0_22] : memref<1x16x1xf32, #tpu.memory_space<vmem>>, vector<1x16x1xf32>
    %38 = vector.shape_cast %36 : vector<16x1xf32> to vector<1x16x1xf32>
    %39 = arith.addf %37, %38 : vector<1x16x1xf32>
    %c0_23 = arith.constant 0 : index
    %c0_24 = arith.constant 0 : index
    %c0_25 = arith.constant 0 : index
    %40 = vector.load %arg7[%c0_23, %c0_24, %c0_25] : memref<1x16x1xf32, #tpu.memory_space<vmem>>, vector<1x16x1xf32>
    tpu.vector_store %arg7[%c0_23, %c0_24, %c0_25], %39 {strides = array<i32>} : memref<1x16x1xf32, #tpu.memory_space<vmem>>, vector<1x16x1xf32>,
    return
  }
  func.func @transform_0(%arg0: i32, %arg1: i32) -> (i32, i32) {
    %c1_i32 = arith.constant 1 : i32
    %0 = arith.muli %arg0, %c1_i32 : i32
    %1 = arith.addi %0, %arg1 : i32
    %c0_i32 = arith.constant 0 : i32
    %2 = arith.minsi %1, %c0_i32 : i32
    %c0_i32_0 = arith.constant 0 : i32
    %c0_i32_1 = arith.constant 0 : i32
    return %2, %c0_i32_0 : i32, i32
  }
  func.func @transform_1(%arg0: i32, %arg1: i32) -> (i32, i32) {
    %c1_i32 = arith.constant 1 : i32
    %0 = arith.muli %arg0, %c1_i32 : i32
    %1 = arith.addi %0, %arg1 : i32
    %c0_i32 = arith.constant 0 : i32
    %2 = arith.minsi %1, %c0_i32 : i32
    %c0_i32_0 = arith.constant 0 : i32
    %c0_i32_1 = arith.constant 0 : i32
    return %2, %c0_i32_0 : i32, i32
  }
  func.func @transform_2(%arg0: i32, %arg1: i32) -> (i32, i32) {
    %c1_i32 = arith.constant 1 : i32
    %0 = arith.muli %arg0, %c1_i32 : i32
    %1 = arith.addi %0, %arg1 : i32
    %c0_i32 = arith.constant 0 : i32
    %2 = arith.minsi %1, %c0_i32 : i32
    %c0_i32_0 = arith.constant 0 : i32
    %c0_i32_1 = arith.constant 0 : i32
    return %2, %c0_i32_0 : i32, i32
  }
  func.func @transform_3(%arg0: i32, %arg1: i32) -> (i32, i32) {
    %c1_i32 = arith.constant 1 : i32
    %0 = arith.muli %arg0, %c1_i32 : i32
    %1 = arith.addi %0, %arg1 : i32
    %c0_i32 = arith.constant 0 : i32
    %2 = arith.minsi %1, %c0_i32 : i32
    %c0_i32_0 = arith.constant 0 : i32
    %c0_i32_1 = arith.constant 0 : i32
    return %2, %c0_i32_0 : i32, i32
  }
  func.func @transform_4(%arg0: i32, %arg1: i32) -> (i32, i32, i32) {
    %c0_i32 = arith.constant 0 : i32
    %c0_i32_0 = arith.constant 0 : i32
    %c0_i32_1 = arith.constant 0 : i32
    return %arg0, %c0_i32, %c0_i32_0 : i32, i32, i32
  }
  func.func @transform_5(%arg0: i32, %arg1: i32) -> (i32, i32, i32) {
    %c0_i32 = arith.constant 0 : i32
    %c0_i32_0 = arith.constant 0 : i32
    %c0_i32_1 = arith.constant 0 : i32
    return %arg0, %c0_i32, %c0_i32_0 : i32, i32, i32
  }
}

</mosaic_0001>

<llo_original>
// kernel: tpu_custom_call.1
$region0: #{tpu_custom_call.1}
  #allocation0 [shape = 'u32[]', space=smem, size = 0x4, offset = 0x4, fixed_abs, tag = 'smem constant byte address 0x4 - core index']
  #allocation1 [shape = 'u32[72,128]{1,0:T(1,128)}', space=vmem, size = 0x9000, scoped, tag = 'internal scratch']
  %s0 = inlined_call_operand.hbm [shape: f32[16,256], index: 0, kind: input, shape index: {}]
  %s1 = inlined_call_operand.hbm [shape: f32[16,256], index: 1, kind: input, shape index: {}]
  %s2 = inlined_call_operand.hbm [shape: f32[16,32], index: 2, kind: input, shape index: {}]
  %s3 = inlined_call_operand.hbm [shape: f32[16,32], index: 3, kind: input, shape index: {}]
  %s4 = inlined_call_operand.vmem [shape: f32[1,16,1], index: 4, kind: output, shape index: {0}]
  %s5 = inlined_call_operand.vmem [shape: f32[1,16,1], index: 5, kind: output, shape index: {1}]
  %6 = xla_tuple %s4, %s5
  %s7 = sld [smem:[#allocation0]]
  $region54: #{tpu_custom_call.1} parent=0
    _
  %s9 = ssub.s32 1, %s7
  %s10 = scalar_select 0, %s9, %s7
  $region1: #{tpu_custom_call.1} parent=0
    #allocation2 [shape = 'u8[16384]{0}', space=vmem, size = 0x4000, scoped, tag = 'input window, operand 0, single buffered']
    #allocation3 [shape = 's32[1]{0}', space=sflag, size = 0x4, scoped, tag = 'scoped memory for tpu_custom_call.1']
    #allocation4 [shape = 'u8[16384]{0}', space=vmem, size = 0x4000, scoped, tag = 'input window, operand 1, single buffered']
    #allocation5 [shape = 's32[1]{0}', space=sflag, size = 0x4, scoped, tag = 'scoped memory for tpu_custom_call.1']
    #allocation6 [shape = 'u8[8192]{0}', space=vmem, size = 0x2000, scoped, tag = 'input window, operand 2, single buffered']
    #allocation7 [shape = 'u8[8192]{0}', space=vmem, size = 0x2000, scoped, tag = 'input window, operand 3, single buffered']
    #allocation8 [shape = 's32[1]{0}', space=sflag, size = 0x4, scoped, tag = 'scoped memory for tpu_custom_call.1']
    %11 = vsyncpa [#allocation3], 0
    %12 = vsyncpa [#allocation5], 0
    %13 = vsyncpa [#allocation8], 0
    // Predicated region
    $region2: #{tpu_custom_call.1} parent=1 // pred_check
      _
    $region3: #{tpu_custom_call.1} parent=1 // pred_check_branch
      %15 = sbr.rel (0) target = $region5
    $region4: #{tpu_custom_call.1} parent=1 // pred_region
      %s16 = sadd.s32 0, 0
      %p17 = scmp.lt.s32.totalorder %s16, 0
      %s18 = scalar_select %p17, %s16, 0
      %s19 = smul.u32 2, %s18
      %21 = vsyncadd [#allocation3], 0
      %s22 = smul.addr %s19, 2
      %s23 = smul.addr %s22, 8
      %s24 = scalar_lea.hbm %s0, %s23
      %s25 = sshll.u32 %s24, 4
      %s26 = int_to_ptr.hbm [resolvable:$true] %s25
      %s27 = sshll.u32 [#allocation2], 4
      %s28 = int_to_ptr.vmem [resolvable:$true] %s27
      %33 = dma.hbm_to_vmem [thread:$0]  %s26, 512, %s28, [#allocation3], 256, 256, 16
    $region5: #{tpu_custom_call.1} parent=1 // pred_fallthru
      _
    // Predicated region
    $region6: #{tpu_custom_call.1} parent=1 // pred_check
      _
    $region7: #{tpu_custom_call.1} parent=1 // pred_check_branch
      %35 = sbr.rel (0) target = $region9
    $region8: #{tpu_custom_call.1} parent=1 // pred_region
      %s36 = sadd.s32 0, 0
      %p37 = scmp.lt.s32.totalorder %s36, 0
      %s38 = scalar_select %p37, %s36, 0
      %s39 = smul.u32 2, %s38
      %41 = vsyncadd [#allocation5], 0
      %s42 = smul.addr %s39, 2
      %s43 = smul.addr %s42, 8
      %s44 = scalar_lea.hbm %s1, %s43
      %s45 = sshll.u32 %s44, 4
      %s46 = int_to_ptr.hbm [resolvable:$true] %s45
      %s47 = sshll.u32 [#allocation4], 4
      %s48 = int_to_ptr.vmem [resolvable:$true] %s47
      %53 = dma.hbm_to_vmem [thread:$0]  %s46, 512, %s48, [#allocation5], 256, 256, 16
    $region9: #{tpu_custom_call.1} parent=1 // pred_fallthru
      _
    // Predicated region
    $region10: #{tpu_custom_call.1} parent=1 // pred_check
      _
    $region11: #{tpu_custom_call.1} parent=1 // pred_check_branch
      %55 = sbr.rel (0) target = $region13
    $region12: #{tpu_custom_call.1} parent=1 // pred_region
      %s56 = sadd.s32 0, 0
      %p57 = scmp.lt.s32.totalorder %s56, 0
      %s58 = scalar_select %p57, %s56, 0
      %s59 = smul.u32 2, %s58
      %61 = vsyncadd [#allocation5], 0
      %s62 = smul.addr %s59, 8
      %s63 = scalar_lea.hbm %s2, %s62
      %s64 = sshll.u32 %s63, 4
      %s65 = int_to_ptr.hbm [resolvable:$true] %s64
      %s66 = sshll.u32 [#allocation6], 4
      %s67 = int_to_ptr.vmem [resolvable:$true] %s66
      %72 = dma.hbm_to_vmem [thread:$0]  %s65, 256, %s67, [#allocation5], 128, 128, 8
    $region13: #{tpu_custom_call.1} parent=1 // pred_fallthru
      _
    // Predicated region
    $region14: #{tpu_custom_call.1} parent=1 // pred_check
      _
    $region15: #{tpu_custom_call.1} parent=1 // pred_check_branch
      %74 = sbr.rel (0) target = $region17
    $region16: #{tpu_custom_call.1} parent=1 // pred_region
      %s75 = sadd.s32 0, 0
      %p76 = scmp.lt.s32.totalorder %s75, 0
      %s77 = scalar_select %p76, %s75, 0
      %s78 = smul.u32 2, %s77
      %80 = vsyncadd [#allocation8], 0
      %s81 = smul.addr %s78, 8
      %s82 = scalar_lea.hbm %s3, %s81
      %s83 = sshll.u32 %s82, 4
      %s84 = int_to_ptr.hbm [resolvable:$true] %s83
      %s85 = sshll.u32 [#allocation7], 4
      %s86 = int_to_ptr.vmem [resolvable:$true] %s85
      %91 = dma.hbm_to_vmem [thread:$0]  %s84, 256, %s86, [#allocation8], 128, 128, 8
    $region17: #{tpu_custom_call.1} parent=1 // pred_fallthru
      _
    // Predicated region
    $region18: #{tpu_custom_call.1} parent=1 // pred_check
      _
    $region19: #{tpu_custom_call.1} parent=1 // pred_check_branch
      %93 = sbr.rel (0) target = $region21
    $region20: #{tpu_custom_call.1} parent=1 // pred_region
      %95 = dma.done [#allocation3], 512
    $region21: #{tpu_custom_call.1} parent=1 // pred_fallthru
      _
    // Predicated region
    $region22: #{tpu_custom_call.1} parent=1 // pred_check
      _
    $region23: #{tpu_custom_call.1} parent=1 // pred_check_branch
      %97 = sbr.rel (0) target = $region25
    $region24: #{tpu_custom_call.1} parent=1 // pred_region
      %99 = dma.done [#allocation5], 512
    $region25: #{tpu_custom_call.1} parent=1 // pred_fallthru
      _
    // Predicated region
    $region26: #{tpu_custom_call.1} parent=1 // pred_check
      _
    $region27: #{tpu_custom_call.1} parent=1 // pred_check_branch
      %101 = sbr.rel (0) target = $region29
    $region28: #{tpu_custom_call.1} parent=1 // pred_region
      %103 = dma.done [#allocation5], 256
    $region29: #{tpu_custom_call.1} parent=1 // pred_fallthru
      _
    // Predicated region
    $region30: #{tpu_custom_call.1} parent=1 // pred_check
      _
    $region31: #{tpu_custom_call.1} parent=1 // pred_check_branch
      %105 = sbr.rel (0) target = $region33
    $region32: #{tpu_custom_call.1} parent=1 // pred_region
      %107 = dma.done [#allocation8], 256
    $region33: #{tpu_custom_call.1} parent=1 // pred_fallthru
      _
    %s108 = sadd.s32 0, 0
    %p109 = scmp.lt.s32.totalorder %s108, 0
    %s110 = scalar_select %p109, %s108, 0
    %s111 = smul.u32 2, %s110
    %s112 = sadd.s32 0, 0
    %p113 = scmp.lt.s32.totalorder %s112, 0
    %s114 = scalar_select %p113, %s112, 0
    %s115 = smul.u32 2, %s114
    %s116 = sadd.s32 0, 0
    %p117 = scmp.lt.s32.totalorder %s116, 0
    %s118 = scalar_select %p117, %s116, 0
    %s119 = smul.u32 2, %s118
    %s120 = sadd.s32 0, 0
    %p121 = scmp.lt.s32.totalorder %s120, 0
    %s122 = scalar_select %p121, %s120, 0
    %s123 = smul.u32 2, %s122
    %p124 = scmp.eq.s32.totalorder 0, 0
    // Predicated region
    $region34: #{tpu_custom_call.1} parent=1 // pred_check
      %p125 = pneg %p124
    $region35: #{tpu_custom_call.1} parent=1 // pred_check_branch
      %127 = sbr.rel (%p125) target = $region37
    $region36: #{tpu_custom_call.1} parent=1 // pred_region
      %vm128 = vcmask 7168
      %129 = vst.msk [vmem:[%s4] sm:$0xff] %vm128, 0.0
      %130 = vst.msk [vmem:[%s4 + $0x8] sm:$0xff] %vm128, 0.0
      %131 = vst.msk [vmem:[%s5] sm:$0xff] %vm128, 0.0
      %132 = vst.msk [vmem:[%s5 + $0x8] sm:$0xff] %vm128, 0.0
    $region37: #{tpu_custom_call.1} parent=1 // pred_fallthru
      _
    %v133 = vld [vmem:[#allocation2] sm:$0xff]
    %v134 = vld [vmem:[#allocation2 + $0x8] sm:$0xff]
    %v135 = vld [vmem:[#allocation2 + $0x10] sm:$0xff]
    %v136 = vld [vmem:[#allocation2 + $0x18] sm:$0xff]
    %v137 = vld [vmem:[#allocation4] sm:$0xff]
    %v138 = vld [vmem:[#allocation4 + $0x8] sm:$0xff]
    %v139 = vld [vmem:[#allocation4 + $0x10] sm:$0xff]
    %v140 = vld [vmem:[#allocation4 + $0x18] sm:$0xff]
    %v141 = vmax.f32 %v133, %v134
    %142 = vmax.xlane.f32.xlu0 %v141
    %v143 = vpop.xlane.xlu0 %142
    %v144 = vmax.f32 %v135, %v136
    %145 = vmax.xlane.f32.xlu0 %v144
    %v146 = vpop.xlane.xlu0 %145
    %v147 = vsub.f32 %v133, %v143
    %v148 = vsub.f32 %v134, %v143
    %v149 = vsub.f32 %v135, %v146
    %v150 = vsub.f32 %v136, %v146
    %v151 = vmul.f32 %v147, 1.442695
    %v152 = vpow.pop %v151
    %v153 = vmul.f32 %v148, 1.442695
    %v154 = vpow.pop %v153
    %v155 = vmul.f32 %v149, 1.442695
    %v156 = vpow.pop %v155
    %v157 = vmul.f32 %v150, 1.442695
    %v158 = vpow.pop %v157
    %v159 = vadd.f32 %v152, %v154
    %160 = vadd.xlane.f32.xlu0 %v159
    %v161 = vpop.xlane.xlu0 %160
    %v162 = vadd.f32 %v156, %v158
    %163 = vadd.xlane.f32.xlu0 %v162
    %v164 = vpop.xlane.xlu0 %163
    %v165 = vlog2.pop %v161
    %v166 = vmul.f32 %v165, 0.6931472
    %v167 = vlog2.pop %v164
    %v168 = vmul.f32 %v167, 0.6931472
    %v169 = vmul.f32 %v133, %v137
    %v170 = vmul.f32 %v134, %v138
    %v171 = vmul.f32 %v135, %v139
    %v172 = vmul.f32 %v136, %v140
    %v173 = vadd.f32 %v169, %v170
    %174 = vadd.xlane.f32.xlu0 %v173
    %v175 = vpop.xlane.xlu0 %174
    %v176 = vadd.f32 %v171, %v172
    %177 = vadd.xlane.f32.xlu0 %v176
    %v178 = vpop.xlane.xlu0 %177
    %v179 = vadd.f32 %v137, %v138
    %180 = vadd.xlane.f32.xlu0 %v179
    %v181 = vpop.xlane.xlu0 %180
    %v182 = vadd.f32 %v139, %v140
    %183 = vadd.xlane.f32.xlu0 %v182
    %v184 = vpop.xlane.xlu0 %183
    %v185 = vadd.f32 %v143, %v166
    %v186 = vadd.f32 %v146, %v168
    %v187 = vmul.f32 %v181, %v185
    %v188 = vmul.f32 %v184, %v186
    %v189 = vsub.f32 %v187, %v175
    %v190 = vsub.f32 %v188, %v178
    %v191 = vld [vmem:[%s4] sm:$0xff]
    %v192 = vld [vmem:[%s4 + $0x8] sm:$0xff]
    %v193 = vadd.f32 %v191, %v189
    %v194 = vadd.f32 %v192, %v190
    %vm195 = vcmask 7168
    %196 = vst.msk [vmem:[%s4] sm:$0xff] %vm195, %v193
    %197 = vst.msk [vmem:[%s4 + $0x8] sm:$0xff] %vm195, %v194
    %v198 = vld [vmem:[#allocation6] sm:$0xff]
    %v199 = vld [vmem:[#allocation6 + $0x8] sm:$0xff]
    %v200 = vld [vmem:[#allocation7] sm:$0xff]
    %v201 = vld [vmem:[#allocation7 + $0x8] sm:$0xff]
    %v202 = vadd.f32 %v200, 1.0
    %v203 = vadd.f32 %v201, 1.0
    %v204 = vmul.f32 %v198, %v198
    %v205 = vmul.f32 %v199, %v199
    %v206 = vsub.f32 %v202, %v204
    %v207 = vsub.f32 %v203, %v205
    %v208 = vmul.f32 %v200, 1.442695
    %v209 = vpow.pop %v208
    %v210 = vmul.f32 %v201, 1.442695
    %v211 = vpow.pop %v210
    %v212 = vsub.f32 %v206, %v209
    %v213 = vsub.f32 %v207, %v211
    %vm214 = vcmask 261120
    %v215 = vsel %vm214, %v212, 0.0
    %216 = vadd.xlane.f32.xlu0 %v215
    %v217 = vpop.xlane.xlu0 %216
    %v218 = vsel %vm214, %v213, 0.0
    %219 = vadd.xlane.f32.xlu0 %v218
    %v220 = vpop.xlane.xlu0 %219
    %v221 = vmul.f32 %v217, -0.5
    %v222 = vmul.f32 %v220, -0.5
    %v223 = vld [vmem:[%s5] sm:$0xff]
    %v224 = vld [vmem:[%s5 + $0x8] sm:$0xff]
    %v225 = vadd.f32 %v223, %v221
    %v226 = vadd.f32 %v224, %v222
    %227 = vst.msk [vmem:[%s5] sm:$0xff] %vm195, %v225
    %228 = vst.msk [vmem:[%s5 + $0x8] sm:$0xff] %vm195, %v226
    // Predicated region
    $region38: #{tpu_custom_call.1} parent=1 // pred_check
      _
    $region39: #{tpu_custom_call.1} parent=1 // pred_check_branch
      %230 = sbr.rel (0) target = $region41
    $region40: #{tpu_custom_call.1} parent=1 // pred_region
      _
    $region41: #{tpu_custom_call.1} parent=1 // pred_fallthru
      _
    // Predicated region
    $region42: #{tpu_custom_call.1} parent=1 // pred_check
      _
    $region43: #{tpu_custom_call.1} parent=1 // pred_check_branch
      %232 = sbr.rel (0) target = $region45
    $region44: #{tpu_custom_call.1} parent=1 // pred_region
      _
    $region45: #{tpu_custom_call.1} parent=1 // pred_fallthru
      _
    // Predicated region
    $region46: #{tpu_custom_call.1} parent=1 // pred_check
      _
    $region47: #{tpu_custom_call.1} parent=1 // pred_check_branch
      %234 = sbr.rel (0) target = $region49
    $region48: #{tpu_custom_call.1} parent=1 // pred_region
      _
    $region49: #{tpu_custom_call.1} parent=1 // pred_fallthru
      _
    // Predicated region
    $region50: #{tpu_custom_call.1} parent=1 // pred_check
      _
    $region51: #{tpu_custom_call.1} parent=1 // pred_check_branch
      %236 = sbr.rel (0) target = $region53
    $region52: #{tpu_custom_call.1} parent=1 // pred_region
      _
    $region53: #{tpu_custom_call.1} parent=1 // pred_fallthru
      _
    %237 = vsyncpa [#allocation3], 1
    %238 = vsyncpa [#allocation5], 1
    %239 = vsyncpa [#allocation8], 1

</llo_original>
